<compile_context>
chip_gen: v6e
topology: v6e:2x2x1
jax: 0.10.0
libtpu: 0.0.40
codegen_flags: <defaults>
</compile_context>

<pallas_src>
import jax
import jax.numpy as jnp
from jax.experimental import pallas as pl
from jax.experimental.pallas import tpu as pltpu


def _sublane_granularity(dtype):
    itemsize = jnp.dtype(dtype).itemsize
    return {4: 8, 2: 16, 1: 32}.get(itemsize, 8)


# ----------------------------------------------------------------------------
# Kernel 1: spatial max reduction  (pred_mask_prob.view(bs, ch, -1).max(-1))
# ----------------------------------------------------------------------------
def _spatial_max_kernel(x_ref, o_ref):
    o_ref[...] = jnp.max(x_ref[...], axis=-1, keepdims=True)


def spatial_max(x2d, *, max_rows=512, block_budget_bytes=4 << 20):
    """x2d: [R, HW] (native dtype) -> [R, 1] row-wise max."""
    R, HW = x2d.shape
    itemsize = jnp.dtype(x2d.dtype).itemsize
    gran = _sublane_granularity(x2d.dtype)
    per_row = max(HW * itemsize, 1)
    tile_rows = max(gran, min(max_rows, (block_budget_bytes // per_row) // gran * gran))
    if R <= tile_rows:
        tile_rows = R  # full extent (allowed regardless of the (8,128) rule)
    # Partial last block: padded rows produce garbage maxima, but those land on
    # out-of-bounds output rows whose stores are masked -> valid rows unaffected.
    # TODO(synk): add an "arbitrary" HW-tiling axis with a running-max accumulator
    # if a single row (ht*wd*itemsize) ever exceeds the per-block VMEM budget.
    return pl.pallas_call(
        _spatial_max_kernel,
        out_shape=jax.ShapeDtypeStruct((R, 1), x2d.dtype),
        grid=(pl.cdiv(R, tile_rows),),
        in_specs=[pl.BlockSpec((tile_rows, HW), lambda i: (i, 0))],
        out_specs=pl.BlockSpec((tile_rows, 1), lambda i: (i, 0)),
        compiler_params=pltpu.CompilerParams(
            dimension_semantics=("parallel",)),
    )(x2d)


# ----------------------------------------------------------------------------
# Kernel 2: weights + adjusted-smooth-L1 iou loss + weighted CE, fused & tiled
#           over the proposal (gt/row) axis, scalar accumulators in SMEM.
# ----------------------------------------------------------------------------
def _make_loss_kernel(n_rows, tile_rows, theta, entity_prob_thr, remove_thr,
                      cls_pos_iou_thr):
    less_grad_factor = 1.0 / (2.0 * theta)
    less_loss_bias = less_grad_factor * theta * theta

    def kernel(preds_cls_ref, preds_iou_ref, gts_iou_ref, gts_cls_ref, cw_ref,
               maxprob_ref, rand_ref, iou_out_ref, cls_out_ref, wsum_ref):
        step = pl.program_id(0)

        @pl.when(step == 0)
        def _():
            iou_out_ref[0, 0] = jnp.float32(0.0)
            cls_out_ref[0, 0] = jnp.float32(0.0)
            wsum_ref[0] = jnp.float32(0.0)

        tm, C = preds_cls_ref.shape
        zero = jnp.float32(0.0)

        logits = preds_cls_ref[...].astype(jnp.float32)      # [tm, C]
        cw = cw_ref[...].astype(jnp.float32)                  # [1, C]
        cls_ids = gts_cls_ref[...]                             # [tm, 1] int32
        iou_col = gts_iou_ref[...].astype(jnp.float32)         # [tm, 1]
        maxprob = maxprob_ref[...].astype(jnp.float32)          # [tm, 1]
        rnd = rand_ref[...].astype(jnp.float32)                 # [tm, 1]
        p_row = preds_iou_ref[...].astype(jnp.float32)          # [1, N]

        # validity mask for the (possibly partial) last row block
        row_ids = jax.lax.broadcasted_iota(jnp.int32, (tm, 1), 0) + step * tile_rows
        valid = row_ids < n_rows                                 # [tm, 1] bool

        # one-hot gather of cw[cls] per proposal
        col_ids = jax.lax.broadcasted_iota(jnp.int32, (tm, C), 1)
        onehot = (col_ids == cls_ids).astype(jnp.float32)        # [tm, C]
        w_cls = jnp.sum(onehot * cw, axis=-1, keepdims=True)     # [tm, 1]
        w0 = cw[0, 0]

        # weight selection (same branch order as the torch code)
        remove = jnp.logical_and(maxprob < entity_prob_thr, rnd < remove_thr)
        weights = jnp.where(remove, zero,
                            jnp.where(iou_col < cls_pos_iou_thr, w0, w_cls + w0))
        weights = jnp.where(valid, weights, zero)                 # [tm, 1]

        # ---- iou loss: exact torch [N,1]-[N] broadcast, computed as a [tm,N]
        #      slab per step; single-select smooth-L1; row-sum BEFORE the weight
        #      multiply (no N^2 weight mults). Row = gt index j, weight = w_j.
        iou_diff = jnp.abs(iou_col - p_row)                       # [tm, N]
        smooth = jnp.where(iou_diff < theta,
                           iou_diff * iou_diff * less_grad_factor,
                           iou_diff - theta + less_loss_bias)
        row_sums = jnp.sum(smooth, axis=-1, keepdims=True)        # [tm, 1]
        row_sums = jnp.where(valid, row_sums, zero)
        iou_partial = jnp.sum(row_sums * weights)

        # ---- weighted cross-entropy, reduction='none' ----
        # TODO(synk): if C<<128 ever becomes the hot spot, lay the CE path out
        # lane-major on N ([C, tm]); the O(tm*N) iou slab dominates here.
        m = jnp.max(logits, axis=-1, keepdims=True)
        lse = m + jnp.log(jnp.sum(jnp.exp(logits - m), axis=-1, keepdims=True))
        tgt_logit = jnp.sum(onehot * logits, axis=-1, keepdims=True)
        ce = jnp.where(valid, w_cls * (lse - tgt_logit), zero)    # [tm, 1]
        cls_partial = jnp.sum(ce * weights)

        iou_out_ref[0, 0] += iou_partial
        cls_out_ref[0, 0] += cls_partial
        wsum_ref[0] += jnp.sum(weights)

        @pl.when(step == pl.num_programs(0) - 1)
        def _():
            inv = 1.0 / (wsum_ref[0] + jnp.float32(0.0001))
            iou_out_ref[0, 0] = iou_out_ref[0, 0] * inv
            cls_out_ref[0, 0] = cls_out_ref[0, 0] * inv

    return kernel


def classify_mc_loss_kernel(preds_cls, preds_iou, gts_iou, gts_cls, class_weights,
                            maxprob_pj, rand_vals, *, theta=0.1,
                            entity_prob_thr=0.1, remove_thr=0.9,
                            cls_pos_iou_thr=0.2, max_tile_rows=256,
                            block_budget_bytes=4 << 20):
    N, C = preds_cls.shape

    # Row tile bounds the dominant [tile, N] f32 temporary of the iou term.
    per_row = max(N * 4, 1)
    tile = max(32, min(max_tile_rows, (block_budget_bytes // per_row) // 32 * 32))
    if N <= tile:
        tile = N  # single full block

    kernel = _make_loss_kernel(N, tile, theta, entity_prob_thr, remove_thr,
                               cls_pos_iou_thr)
    row_spec = lambda last: pl.BlockSpec((tile, last), lambda i: (i, 0))
    smem_out = pl.BlockSpec((1, 1), lambda i: (0, 0),
                            memory_space=pltpu.MemorySpace.SMEM)

    iou_loss, cls_loss = pl.pallas_call(
        kernel,
        out_shape=(jax.ShapeDtypeStruct((1, 1), jnp.float32),
                   jax.ShapeDtypeStruct((1, 1), jnp.float32)),
        grid=(pl.cdiv(N, tile),),
        in_specs=[row_spec(C),                              # preds_cls   [N, C]
                  pl.BlockSpec((1, N), lambda i: (0, 0)),   # preds_iou   [1, N] (resident)
                  row_spec(1),                              # gts_iou     [N, 1]
                  row_spec(1),                              # gts_cls     [N, 1]
                  pl.BlockSpec((1, C), lambda i: (0, 0)),   # class wts   [1, C] (resident)
                  row_spec(1),                              # maxprob     [N, 1]
                  row_spec(1)],                             # rand        [N, 1]
        out_specs=(smem_out, smem_out),
        scratch_shapes=[pltpu.SMEM((1,), jnp.float32)],
        compiler_params=pltpu.CompilerParams(
            dimension_semantics=("arbitrary",),
            vmem_limit_bytes=32 * 1024 * 1024),
    )(preds_cls,
      preds_iou.reshape(1, N),
      gts_iou.reshape(N, 1),
      gts_cls.reshape(N, 1).astype(jnp.int32),
      class_weights.reshape(1, C),
      maxprob_pj.reshape(N, 1),
      rand_vals.reshape(N, 1))
    return iou_loss[0, 0], cls_loss[0, 0]


# ----------------------------------------------------------------------------
# Module wrapper (mirrors ClassifyMCLoss.forward; gathers in plain JAX)
# ----------------------------------------------------------------------------
class ClassifyMCLossPallas:
    def __init__(self, class_weights=None, fg_stCH=1, cls_pos_iou_thr=0.2):
        self.fg_stCH = fg_stCH
        self.cls_pos_iou_thr = cls_pos_iou_thr
        if class_weights is not None:
            cw = jnp.ones_like(class_weights[fg_stCH - 1:])
            cw = cw.at[1:].set(class_weights[fg_stCH:])
            self.class_weights_cls = cw
        else:
            self.class_weights_cls = None

    def __call__(self, preds, target_ids, map_indices, map_ious, pred_mask_prob,
                 rng_key):
        cls_logits = preds['cls_logits']   # [bs, ch, num_classes]
        iou_scores = preds['iou_scores']   # [bs, ch, 1]
        bs, ch, C = cls_logits.shape
        fg = self.fg_stCH
        K = ch - fg
        N = bs * K

        cw = self.class_weights_cls
        if cw is None:
            cw = jnp.ones((C,), jnp.float32)   # torch path: [1.0] * num_classes

        # spatial max over (ht, wd): Pallas reduction kernel, native dtype in HBM
        maxprob = spatial_max(pred_mask_prob.reshape(bs * ch, -1)).reshape(bs, ch)

        # gathers (glue)
        pj = map_indices[:, 0, fg:]                               # [bs, K]
        gj = map_indices[:, 1, fg:]                               # [bs, K]
        preds_cls = jnp.take_along_axis(cls_logits, pj[:, :, None], axis=1
                                        ).reshape(N, C)
        preds_iou = jnp.take_along_axis(iou_scores, pj[:, :, None], axis=1
                                        ).reshape(N)
        maxprob_pj = jnp.take_along_axis(maxprob, pj, axis=1).reshape(N)
        tid_g = jnp.take_along_axis(target_ids, gj, axis=1)        # [bs, K]
        gts_cls = jnp.maximum(tid_g * 0, tid_g - fg + 1).reshape(N)
        gts_iou = map_ious[:, fg:].reshape(N)

        # deterministic replacement for the per-proposal torch.rand(1) draws
        rand_vals = jax.random.uniform(rng_key, (N,), jnp.float32)

        iou_loss, cls_loss = classify_mc_loss_kernel(
            preds_cls, preds_iou, gts_iou, gts_cls, cw, maxprob_pj, rand_vals,
            cls_pos_iou_thr=self.cls_pos_iou_thr)
        return {'iou_loss': iou_loss, 'cls_loss': cls_loss}


# ----------------------------------------------------------------------------
if __name__ == "__main__":
    key = jax.random.PRNGKey(0)
    k1, k2, k3, k4, k5, k6, k7, k8 = jax.random.split(key, 8)

    bs, ch, num_classes, fg_stCH = 2, 8, 5, 1
    ht, wd = 16, 16

    cls_logits = jax.random.normal(k1, (bs, ch, num_classes), jnp.float32)
    iou_scores = jax.random.uniform(k2, (bs, ch, 1), jnp.float32)
    target_ids = jax.random.randint(k3, (bs, ch), 0, num_classes)     # [bs, ch']
    map_pred = jax.random.randint(k4, (bs, 1, ch), 0, ch)
    map_gt = jax.random.randint(k5, (bs, 1, ch), 0, ch)
    map_indices = jnp.concatenate([map_pred, map_gt], axis=1)          # [bs, 2, ch]
    map_ious = jax.random.uniform(k6, (bs, ch), jnp.float32)
    pred_mask_prob = jax.random.uniform(k7, (bs, ch, ht, wd), jnp.float32)

    # deterministic class_weights; length = num_classes + fg_stCH - 1
    class_weights = jnp.linspace(0.5, 1.5, num_classes + fg_stCH - 1,
                                 dtype=jnp.float32)

    loss_mod = ClassifyMCLossPallas(class_weights=class_weights,
                                    fg_stCH=fg_stCH, cls_pos_iou_thr=0.2)
    out = loss_mod({'cls_logits': cls_logits, 'iou_scores': iou_scores},
                   target_ids, map_indices, map_ious, pred_mask_prob, k8)
    jax.block_until_ready(out)
    print("KERNEL_OK")
</pallas_src>

<mosaic_0001>
module attributes {stable_mosaic.version = 11 : i64} {
  func.func @_spatial_max_kernel(%arg0: i32, %arg1: memref<16x256xf32, #tpu.memory_space<vmem>>, %arg2: memref<16x1xf32, #tpu.memory_space<vmem>>) attributes {dimension_semantics = [#tpu.dimension_semantics<parallel>], iteration_bounds = array<i64: 1>, scalar_prefetch = 0 : i64, scratch_operands = 0 : i64, tpu.core_type = #tpu.core_type<tc>, window_params = [{transform_indices = @transform_0, window_bounds = array<i64: 16, 256>}, {transform_indices = @transform_1, window_bounds = array<i64: 16, 1>}]} {
    %c0 = arith.constant 0 : index
    %c0_0 = arith.constant 0 : index
    %0 = vector.load %arg1[%c0, %c0_0] : memref<16x256xf32, #tpu.memory_space<vmem>>, vector<16x256xf32>
    %cst = arith.constant dense<0xFF800000> : vector<16xf32>
    %1 = vector.multi_reduction <maximumf>, %0, %cst [1] : vector<16x256xf32> to vector<16xf32>
    %2 = vector.shape_cast %1 : vector<16xf32> to vector<16x1xf32>
    %c0_1 = arith.constant 0 : index
    %c0_2 = arith.constant 0 : index
    %3 = vector.load %arg2[%c0_1, %c0_2] : memref<16x1xf32, #tpu.memory_space<vmem>>, vector<16x1xf32>
    tpu.vector_store %arg2[%c0_1, %c0_2], %2 {strides = array<i32>} : memref<16x1xf32, #tpu.memory_space<vmem>>, vector<16x1xf32>,
    return
  }
  func.func @transform_0(%arg0: i32) -> (i32, i32) {
    %c0_i32 = arith.constant 0 : i32
    %c0_i32_0 = arith.constant 0 : i32
    return %arg0, %c0_i32 : i32, i32
  }
  func.func @transform_1(%arg0: i32) -> (i32, i32) {
    %c0_i32 = arith.constant 0 : i32
    %c0_i32_0 = arith.constant 0 : i32
    return %arg0, %c0_i32 : i32, i32
  }
}

</mosaic_0001>

<llo_original>
// kernel: tpu_custom_call.1
$region0: #{tpu_custom_call.1}
  #allocation0 [shape = 'u32[]', space=smem, size = 0x4, offset = 0x4, fixed_abs, tag = 'smem constant byte address 0x4 - core index']
  #allocation1 [shape = 'u32[144,128]{1,0:T(1,128)}', space=vmem, size = 0x12000, scoped, tag = 'internal scratch']
  %s0 = inlined_call_operand.hbm [shape: f32[16,256], index: 0, kind: input, shape index: {}]
  %s1 = inlined_call_operand.vmem [shape: f32[16,1], index: 1, kind: output, shape index: {}]
  %s2 = sld [smem:[#allocation0]]
  $region18: #{tpu_custom_call.1} parent=0
    _
  %s4 = ssub.s32 1, %s2
  %s5 = scalar_select 0, %s4, %s2
  $region1: #{tpu_custom_call.1} parent=0
    #allocation2 [shape = 'u8[16384]{0}', space=vmem, size = 0x4000, scoped, tag = 'input window, operand 0, single buffered']
    #allocation3 [shape = 's32[1]{0}', space=sflag, size = 0x4, scoped, tag = 'scoped memory for tpu_custom_call.1']
    %6 = vsyncpa [#allocation3], 0
    // Predicated region
    $region2: #{tpu_custom_call.1} parent=1 // pred_check
      _
    $region3: #{tpu_custom_call.1} parent=1 // pred_check_branch
      %8 = sbr.rel (0) target = $region5
    $region4: #{tpu_custom_call.1} parent=1 // pred_region
      %s10 = ssub.s32 512, 512
      %11 = vsyncadd [#allocation3], %s10
      %s12 = sshll.u32 [#allocation2], 4
      %s13 = int_to_ptr.vmem [resolvable:$true] %s12
      %18 = dma.hbm_to_vmem [thread:$0]  %s0, 512, %s13, [#allocation3], 256, 256, 16
    $region5: #{tpu_custom_call.1} parent=1 // pred_fallthru
      _
    // Predicated region
    $region6: #{tpu_custom_call.1} parent=1 // pred_check
      _
    $region7: #{tpu_custom_call.1} parent=1 // pred_check_branch
      %20 = sbr.rel (0) target = $region9
    $region8: #{tpu_custom_call.1} parent=1 // pred_region
      %21 = dma.done [#allocation3], 512
    $region9: #{tpu_custom_call.1} parent=1 // pred_fallthru
      _
    %v22 = vld [vmem:[#allocation2] sm:$0xff]
    %v23 = vld [vmem:[#allocation2 + $0x8] sm:$0xff]
    %v24 = vld [vmem:[#allocation2 + $0x10] sm:$0xff]
    %v25 = vld [vmem:[#allocation2 + $0x18] sm:$0xff]
    %v26 = vmax.f32 %v22, %v23
    %27 = vmax.xlane.f32.xlu0 %v26
    %v28 = vpop.xlane.xlu0 %27
    %v29 = vmax.f32 %v24, %v25
    %30 = vmax.xlane.f32.xlu0 %v29
    %v31 = vpop.xlane.xlu0 %30
    %vm32 = vcmask 7168
    %33 = vst.msk [vmem:[%s1] sm:$0xff] %vm32, %v28
    %34 = vst.msk [vmem:[%s1 + $0x8] sm:$0xff] %vm32, %v31
    // Predicated region
    $region10: #{tpu_custom_call.1} parent=1 // pred_check
      _
    $region11: #{tpu_custom_call.1} parent=1 // pred_check_branch
      %36 = sbr.rel (0) target = $region13
    $region12: #{tpu_custom_call.1} parent=1 // pred_region
      _
    $region13: #{tpu_custom_call.1} parent=1 // pred_fallthru
      _
    // Predicated region
    $region14: #{tpu_custom_call.1} parent=1 // pred_check
      _
    $region15: #{tpu_custom_call.1} parent=1 // pred_check_branch
      %38 = sbr.rel (0) target = $region17
    $region16: #{tpu_custom_call.1} parent=1 // pred_region
      _
    $region17: #{tpu_custom_call.1} parent=1 // pred_fallthru
      _
    %39 = vsyncpa [#allocation3], 1

</llo_original>
